<compile_context>
chip_gen: v6e
topology: v6e:2x2x1
jax: 0.10.0
libtpu: 0.0.40
codegen_flags: <defaults>
</compile_context>

<pallas_src>
import functools

import jax
import jax.numpy as jnp
from jax.experimental import pallas as pl
from jax.experimental.pallas import tpu as pltpu

LN_EPS = 1e-5  # PyTorch nn.LayerNorm default

_MiB = 1024 * 1024
# Keep both bf16 weight matrices resident in VMEM when they fit this budget.
_RESIDENT_WEIGHT_BYTES = 16 * _MiB
# Tile-selection target, leaving headroom under v7x's 64 MiB physical VMEM per TC.
_VMEM_TARGET_BYTES = 48 * _MiB


def _layernorm_f32(x_f32, gamma, beta):
    mean = jnp.mean(x_f32, axis=-1, keepdims=True)
    var = jnp.mean(jnp.square(x_f32 - mean), axis=-1, keepdims=True)
    return (x_f32 - mean) * jax.lax.rsqrt(var + LN_EPS) * gamma + beta


def mlp_block_kernel_resident(x_ref, g_ref, b_ref, w1_ref, b1_ref, w2_ref, b2_ref, o_ref):
    # LayerNorm in f32 (population variance, PyTorch semantics); bf16 into the MXU.
    xn = _layernorm_f32(x_ref[...].astype(jnp.float32), g_ref[...], b_ref[...])
    xn = xn.astype(jnp.bfloat16)
    # Linear(E -> M): bf16 operands, f32 accumulate on the MXU.
    h = jnp.dot(xn, w1_ref[...], preferred_element_type=jnp.float32)
    # b1-add + tanh-GELU in bf16 (tanh -> EUP slot; bf16 packs 2/lane on v6e/v7x VPU).
    h = h.astype(jnp.bfloat16) + b1_ref[...]
    h = jax.nn.gelu(h, approximate=True)
    # Linear(M -> E) + b2 (f32 epilogue).
    out = jnp.dot(h, w2_ref[...], preferred_element_type=jnp.float32)
    o_ref[...] = (out + b2_ref[...]).astype(o_ref.dtype)


def mlp_block_kernel_chunked(x_ref, g_ref, b_ref, w1_ref, b1_ref, w2_ref, b2_ref, o_ref,
                             acc_ref, xn_ref):
    k = pl.program_id(1)
    nk = pl.num_programs(1)

    @pl.when(k == 0)
    def _():
        # LayerNorm computed once per token tile; cached as bf16 for the MXU.
        xn = _layernorm_f32(x_ref[...].astype(jnp.float32), g_ref[...], b_ref[...])
        xn_ref[...] = xn.astype(xn_ref.dtype)
        acc_ref[...] = jnp.zeros_like(acc_ref)

    # Linear(E -> current mlp chunk) + bf16 tanh-GELU, then accumulate this
    # chunk's contribution to Linear(mlp -> E) into the f32 accumulator.
    h = jnp.dot(xn_ref[...], w1_ref[...], preferred_element_type=jnp.float32)
    h = h.astype(jnp.bfloat16) + b1_ref[...]
    h = jax.nn.gelu(h, approximate=True)
    acc_ref[...] += jnp.dot(h, w2_ref[...], preferred_element_type=jnp.float32)

    @pl.when(k == nk - 1)
    def _():
        # b2 added once in the epilogue.
        o_ref[...] = (acc_ref[...] + b2_ref[...]).astype(o_ref.dtype)


def _single_buffered(block_shape, index_map):
    """Constant-index operand: single-buffer it (never re-DMA'd across the grid)."""
    if hasattr(pl, "Buffered"):
        try:
            return pl.BlockSpec(block_shape, index_map, pipeline_mode=pl.Buffered(1))
        except TypeError:  # older Pallas without pipeline_mode: fall back to default
            pass
    return pl.BlockSpec(block_shape, index_map)


def _vmem_estimate(tile_t, tile_m, E, x_bytes, out_bytes, weight_buffers):
    act = 2 * tile_t * E * (x_bytes + out_bytes)      # x + out tiles (double-buffered)
    wgt = weight_buffers * 2 * E * tile_m * 2          # bf16 W1/W2 blocks
    tmp = tile_t * E * (4 + 2)                         # LayerNorm f32 + bf16
    tmp += tile_t * tile_m * (4 + 2 + 2)               # h f32, h bf16, GELU temps
    tmp += tile_t * E * 4                              # f32 accumulator / epilogue
    return act + wgt + tmp


def _pick_tile_t(tokens, tile_m, E, x_bytes, out_bytes, weight_buffers, candidates):
    divides = [c for c in candidates if tokens % c == 0]
    # Prefer >= 2 token tiles so the "parallel" axis can split across v7x's 2 TCs,
    # while keeping the VMEM estimate under budget.
    for c in divides:
        if tokens // c >= 2 and _vmem_estimate(
                c, tile_m, E, x_bytes, out_bytes, weight_buffers) <= _VMEM_TARGET_BYTES:
            return c
    for c in divides:
        if _vmem_estimate(c, tile_m, E, x_bytes, out_bytes, weight_buffers) <= _VMEM_TARGET_BYTES:
            return c
    return divides[-1] if divides else tokens


@functools.partial(jax.jit, static_argnames=("tile_t", "tile_m"))
def mlp_block(x, gamma, beta, w1, b1, w2, b2, *, tile_t=None, tile_m=None):
    """x: (batch, seq, embed); w1: (embed, mlp); w2: (mlp, embed). Returns x.shape/x.dtype."""
    B, S, E = x.shape
    M = w1.shape[1]
    tokens = B * S
    xf = x.reshape(tokens, E)
    x_bytes = xf.dtype.itemsize
    out_bytes = x.dtype.itemsize

    # Weights + b1 shipped as bf16 (halves weight DMA, feeds the MXU / bf16 GELU);
    # LayerNorm params and b2 (f32 epilogue add) stay f32.
    w1b = w1.astype(jnp.bfloat16)
    w2b = w2.astype(jnp.bfloat16)
    g2 = gamma.reshape(1, E).astype(jnp.float32)
    be2 = beta.reshape(1, E).astype(jnp.float32)
    b1_2 = b1.reshape(1, M).astype(jnp.bfloat16)
    b2_2 = b2.reshape(1, E).astype(jnp.float32)

    weight_bytes = 2 * E * M * 2  # bf16 W1 + W2
    resident = (tile_m == M) or (tile_m is None and weight_bytes <= _RESIDENT_WEIGHT_BYTES)

    if resident:
        if tile_t is None:
            tile_t = _pick_tile_t(tokens, M, E, x_bytes, out_bytes, 1, (512, 256, 128))
        assert tokens % tile_t == 0
        grid = (tokens // tile_t,)
        in_specs = [
            pl.BlockSpec((tile_t, E), lambda i: (i, 0)),   # x tile
            _single_buffered((1, E), lambda i: (0, 0)),    # gamma
            _single_buffered((1, E), lambda i: (0, 0)),    # beta
            _single_buffered((E, M), lambda i: (0, 0)),    # W1 (resident, DMA'd once)
            _single_buffered((1, M), lambda i: (0, 0)),    # b1
            _single_buffered((M, E), lambda i: (0, 0)),    # W2 (resident, DMA'd once)
            _single_buffered((1, E), lambda i: (0, 0)),    # b2
        ]
        out_specs = pl.BlockSpec((tile_t, E), lambda i: (i, 0))
        scratch_shapes = []
        kernel = mlp_block_kernel_resident
        dim_sem = ("parallel",)
        vmem_est = _vmem_estimate(tile_t, M, E, x_bytes, out_bytes, 1)
    else:
        if tile_m is None:
            tile_m = next((c for c in (512, 256, 128) if M % c == 0), M)
        if tile_t is None:
            # Larger token tile raises flops/weight-byte past the HBM roofline crossover.
            tile_t = _pick_tile_t(tokens, tile_m, E, x_bytes, out_bytes, 2,
                                  (1024, 512, 256, 128))
        assert tokens % tile_t == 0 and M % tile_m == 0
        grid = (tokens // tile_t, M // tile_m)
        in_specs = [
            pl.BlockSpec((tile_t, E), lambda i, k: (i, 0)),      # x tile (resident over k)
            _single_buffered((1, E), lambda i, k: (0, 0)),       # gamma
            _single_buffered((1, E), lambda i, k: (0, 0)),       # beta
            pl.BlockSpec((E, tile_m), lambda i, k: (0, k)),      # W1 chunk
            pl.BlockSpec((1, tile_m), lambda i, k: (0, k)),      # b1 chunk
            pl.BlockSpec((tile_m, E), lambda i, k: (k, 0)),      # W2 chunk
            _single_buffered((1, E), lambda i, k: (0, 0)),       # b2
        ]
        out_specs = pl.BlockSpec((tile_t, E), lambda i, k: (i, 0))
        scratch_shapes = [
            pltpu.VMEM((tile_t, E), jnp.float32),    # output accumulator over k
            pltpu.VMEM((tile_t, E), jnp.bfloat16),   # cached LayerNorm(x)
        ]
        kernel = mlp_block_kernel_chunked
        dim_sem = ("parallel", "arbitrary")
        vmem_est = _vmem_estimate(tile_t, tile_m, E, x_bytes, out_bytes, 2)

    # Explicit scoped-VMEM limit: above v5e's 16 MiB / v6e,v7x 32 MiB defaults,
    # capped below v7x's 64 MiB physical per-TC.
    vmem_limit = int(max(32 * _MiB, min(vmem_est * 5 // 4, 64 * _MiB)))

    out = pl.pallas_call(
        kernel,
        out_shape=jax.ShapeDtypeStruct((tokens, E), x.dtype),
        grid_spec=pltpu.PrefetchScalarGridSpec(
            num_scalar_prefetch=0,
            grid=grid,
            in_specs=in_specs,
            out_specs=out_specs,
            scratch_shapes=scratch_shapes,
        ),
        compiler_params=pltpu.CompilerParams(
            dimension_semantics=dim_sem,
            vmem_limit_bytes=vmem_limit,
        ),
    )(xf, g2, be2, w1b, b1_2, w2b, b2_2)

    return out.reshape(B, S, E)


def reference_mlp_block(x, gamma, beta, w1, b1, w2, b2):
    xf = x.astype(jnp.float32)
    mean = jnp.mean(xf, axis=-1, keepdims=True)
    var = jnp.mean(jnp.square(xf - mean), axis=-1, keepdims=True)
    xn = (xf - mean) * jax.lax.rsqrt(var + LN_EPS) * gamma + beta
    h = jax.nn.gelu(xn @ w1 + b1, approximate=False)   # PyTorch nn.GELU() (erf)
    return (h @ w2 + b2).astype(x.dtype)


if __name__ == "__main__":
    # Small shapes consistent with the module: (batch, seq, embedding_dim), mlp_size.
    B, S, E, M = 2, 8, 32, 128

    key = jax.random.PRNGKey(0)
    kx, kg, kb, kw1, kb1, kw2, kb2 = jax.random.split(key, 7)

    x = jax.random.normal(kx, (B, S, E), dtype=jnp.float32)
    gamma = jnp.ones((E,), jnp.float32) + 0.01 * jax.random.normal(kg, (E,), jnp.float32)
    beta = 0.01 * jax.random.normal(kb, (E,), jnp.float32)
    w1 = 0.05 * jax.random.normal(kw1, (E, M), dtype=jnp.float32)
    b1 = 0.01 * jax.random.normal(kb1, (M,), dtype=jnp.float32)
    w2 = 0.05 * jax.random.normal(kw2, (M, E), dtype=jnp.float32)
    b2 = 0.01 * jax.random.normal(kb2, (E,), dtype=jnp.float32)

    out = mlp_block(x, gamma, beta, w1, b1, w2, b2)
    out = jax.block_until_ready(out)

    ref = reference_mlp_block(x, gamma, beta, w1, b1, w2, b2)
    assert out.shape == x.shape and out.dtype == x.dtype
    # bf16 MXU operands + bf16 tanh-GELU (per perf review) => loose tolerance vs f32/erf ref.
    assert jnp.allclose(out, ref, atol=2e-2, rtol=2e-2)

    print("KERNEL_OK")
</pallas_src>

<mosaic_0001>
module attributes {stable_mosaic.version = 11 : i64} {
  func.func @mlp_block_kernel_resident(%arg0: i32, %arg1: memref<16x32xf32, #tpu.memory_space<vmem>>, %arg2: memref<1x32xf32, #tpu.memory_space<vmem>>, %arg3: memref<1x32xf32, #tpu.memory_space<vmem>>, %arg4: memref<32x128xbf16, #tpu.memory_space<vmem>>, %arg5: memref<1x128xbf16, #tpu.memory_space<vmem>>, %arg6: memref<128x32xbf16, #tpu.memory_space<vmem>>, %arg7: memref<1x32xf32, #tpu.memory_space<vmem>>, %arg8: memref<16x32xf32, #tpu.memory_space<vmem>>) attributes {dimension_semantics = [#tpu.dimension_semantics<parallel>], iteration_bounds = array<i64: 1>, scalar_prefetch = 0 : i64, scratch_operands = 0 : i64, tpu.core_type = #tpu.core_type<tc>, window_params = [{transform_indices = @transform_0, window_bounds = array<i64: 16, 32>}, {pipeline_mode = #tpu.pipeline_mode<synchronous>, transform_indices = @transform_1, window_bounds = array<i64: 1, 32>}, {pipeline_mode = #tpu.pipeline_mode<synchronous>, transform_indices = @transform_2, window_bounds = array<i64: 1, 32>}, {pipeline_mode = #tpu.pipeline_mode<synchronous>, transform_indices = @transform_3, window_bounds = array<i64: 32, 128>}, {pipeline_mode = #tpu.pipeline_mode<synchronous>, transform_indices = @transform_4, window_bounds = array<i64: 1, 128>}, {pipeline_mode = #tpu.pipeline_mode<synchronous>, transform_indices = @transform_5, window_bounds = array<i64: 128, 32>}, {pipeline_mode = #tpu.pipeline_mode<synchronous>, transform_indices = @transform_6, window_bounds = array<i64: 1, 32>}, {transform_indices = @transform_7, window_bounds = array<i64: 16, 32>}]} {
    %c0 = arith.constant 0 : index
    %c0_0 = arith.constant 0 : index
    %0 = vector.load %arg1[%c0, %c0_0] : memref<16x32xf32, #tpu.memory_space<vmem>>, vector<16x32xf32>
    %c0_1 = arith.constant 0 : index
    %c0_2 = arith.constant 0 : index
    %1 = vector.load %arg2[%c0_1, %c0_2] : memref<1x32xf32, #tpu.memory_space<vmem>>, vector<1x32xf32>
    %c0_3 = arith.constant 0 : index
    %c0_4 = arith.constant 0 : index
    %2 = vector.load %arg3[%c0_3, %c0_4] : memref<1x32xf32, #tpu.memory_space<vmem>>, vector<1x32xf32>
    %cst = arith.constant dense<0.000000e+00> : vector<16xf32>
    %3 = vector.multi_reduction <add>, %0, %cst [1] : vector<16x32xf32> to vector<16xf32>
    %4 = vector.shape_cast %3 : vector<16xf32> to vector<16x1xf32>
    %cst_5 = arith.constant 3.200000e+01 : f32
    %5 = vector.broadcast %cst_5 : f32 to vector<16x1xf32>
    %6 = arith.divf %4, %5 : vector<16x1xf32>
    %7 = vector.broadcast %6 : vector<16x1xf32> to vector<16x32xf32>
    %8 = arith.subf %0, %7 : vector<16x32xf32>
    %9 = arith.mulf %8, %8 : vector<16x32xf32>
    %cst_6 = arith.constant dense<0.000000e+00> : vector<16xf32>
    %10 = vector.multi_reduction <add>, %9, %cst_6 [1] : vector<16x32xf32> to vector<16xf32>
    %11 = vector.shape_cast %10 : vector<16xf32> to vector<16x1xf32>
    %cst_7 = arith.constant 3.200000e+01 : f32
    %12 = vector.broadcast %cst_7 : f32 to vector<16x1xf32>
    %13 = arith.divf %11, %12 : vector<16x1xf32>
    %14 = vector.broadcast %6 : vector<16x1xf32> to vector<16x32xf32>
    %15 = arith.subf %0, %14 : vector<16x32xf32>
    %cst_8 = arith.constant 9.99999974E-6 : f32
    %16 = vector.broadcast %cst_8 : f32 to vector<16x1xf32>
    %17 = arith.addf %13, %16 : vector<16x1xf32>
    %18 = math.rsqrt %17 : vector<16x1xf32>
    %19 = vector.broadcast %18 : vector<16x1xf32> to vector<16x32xf32>
    %20 = arith.mulf %15, %19 : vector<16x32xf32>
    %21 = vector.broadcast %1 : vector<1x32xf32> to vector<16x32xf32>
    %22 = arith.mulf %20, %21 : vector<16x32xf32>
    %23 = vector.broadcast %2 : vector<1x32xf32> to vector<16x32xf32>
    %24 = arith.addf %22, %23 : vector<16x32xf32>
    %25 = arith.truncf %24 : vector<16x32xf32> to vector<16x32xbf16>
    %c0_9 = arith.constant 0 : index
    %c0_10 = arith.constant 0 : index
    %26 = vector.load %arg4[%c0_9, %c0_10] : memref<32x128xbf16, #tpu.memory_space<vmem>>, vector<32x128xbf16>
    %cst_11 = arith.constant dense<0.000000e+00> : vector<16x128xf32>
    %27 = tpu.matmul %25, %26, %cst_11 {dimension_numbers = #tpu.dot_dimension_numbers<[1], [0], [0], [1], [0, 0, 1, 1], [], []>} : vector<16x32xbf16>, vector<32x128xbf16>, vector<16x128xf32> -> vector<16x128xf32>
    %28 = arith.truncf %27 : vector<16x128xf32> to vector<16x128xbf16>
    %c0_12 = arith.constant 0 : index
    %c0_13 = arith.constant 0 : index
    %29 = vector.load %arg5[%c0_12, %c0_13] : memref<1x128xbf16, #tpu.memory_space<vmem>>, vector<1x128xbf16>
    %30 = vector.broadcast %29 : vector<1x128xbf16> to vector<16x128xbf16>
    %31 = arith.addf %28, %30 : vector<16x128xbf16>
    %32 = arith.mulf %31, %31 : vector<16x128xbf16>
    %33 = arith.mulf %31, %32 : vector<16x128xbf16>
    %cst_14 = arith.constant 4.467770e-02 : bf16
    %34 = vector.broadcast %cst_14 : bf16 to vector<16x128xbf16>
    %35 = arith.mulf %34, %33 : vector<16x128xbf16>
    %36 = arith.addf %31, %35 : vector<16x128xbf16>
    %cst_15 = arith.constant 7.968750e-01 : bf16
    %37 = vector.broadcast %cst_15 : bf16 to vector<16x128xbf16>
    %38 = arith.mulf %37, %36 : vector<16x128xbf16>
    %39 = math.tanh %38 : vector<16x128xbf16>
    %cst_16 = arith.constant 1.000000e+00 : bf16
    %40 = vector.broadcast %cst_16 : bf16 to vector<16x128xbf16>
    %41 = arith.addf %40, %39 : vector<16x128xbf16>
    %cst_17 = arith.constant 5.000000e-01 : bf16
    %42 = vector.broadcast %cst_17 : bf16 to vector<16x128xbf16>
    %43 = arith.mulf %42, %41 : vector<16x128xbf16>
    %44 = arith.mulf %31, %43 : vector<16x128xbf16>
    %c0_18 = arith.constant 0 : index
    %c0_19 = arith.constant 0 : index
    %45 = vector.load %arg6[%c0_18, %c0_19] : memref<128x32xbf16, #tpu.memory_space<vmem>>, vector<128x32xbf16>
    %cst_20 = arith.constant dense<0.000000e+00> : vector<16x32xf32>
    %46 = tpu.matmul %44, %45, %cst_20 {dimension_numbers = #tpu.dot_dimension_numbers<[1], [0], [0], [1], [0, 0, 1, 1], [], []>} : vector<16x128xbf16>, vector<128x32xbf16>, vector<16x32xf32> -> vector<16x32xf32>
    %c0_21 = arith.constant 0 : index
    %c0_22 = arith.constant 0 : index
    %47 = vector.load %arg7[%c0_21, %c0_22] : memref<1x32xf32, #tpu.memory_space<vmem>>, vector<1x32xf32>
    %48 = vector.broadcast %47 : vector<1x32xf32> to vector<16x32xf32>
    %49 = arith.addf %46, %48 : vector<16x32xf32>
    %c0_23 = arith.constant 0 : index
    %c0_24 = arith.constant 0 : index
    %50 = vector.load %arg8[%c0_23, %c0_24] : memref<16x32xf32, #tpu.memory_space<vmem>>, vector<16x32xf32>
    tpu.vector_store %arg8[%c0_23, %c0_24], %49 {strides = array<i32>} : memref<16x32xf32, #tpu.memory_space<vmem>>, vector<16x32xf32>,
    return
  }
  func.func @transform_0(%arg0: i32) -> (i32, i32) {
    %c0_i32 = arith.constant 0 : i32
    %c0_i32_0 = arith.constant 0 : i32
    return %arg0, %c0_i32 : i32, i32
  }
  func.func @transform_1(%arg0: i32) -> (i32, i32) {
    %c0_i32 = arith.constant 0 : i32
    %c0_i32_0 = arith.constant 0 : i32
    %c0_i32_1 = arith.constant 0 : i32
    return %c0_i32, %c0_i32_0 : i32, i32
  }
  func.func @transform_2(%arg0: i32) -> (i32, i32) {
    %c0_i32 = arith.constant 0 : i32
    %c0_i32_0 = arith.constant 0 : i32
    %c0_i32_1 = arith.constant 0 : i32
    return %c0_i32, %c0_i32_0 : i32, i32
  }
  func.func @transform_3(%arg0: i32) -> (i32, i32) {
    %c0_i32 = arith.constant 0 : i32
    %c0_i32_0 = arith.constant 0 : i32
    %c0_i32_1 = arith.constant 0 : i32
    return %c0_i32, %c0_i32_0 : i32, i32
  }
  func.func @transform_4(%arg0: i32) -> (i32, i32) {
    %c0_i32 = arith.constant 0 : i32
    %c0_i32_0 = arith.constant 0 : i32
    %c0_i32_1 = arith.constant 0 : i32
    return %c0_i32, %c0_i32_0 : i32, i32
  }
  func.func @transform_5(%arg0: i32) -> (i32, i32) {
    %c0_i32 = arith.constant 0 : i32
    %c0_i32_0 = arith.constant 0 : i32
    %c0_i32_1 = arith.constant 0 : i32
    return %c0_i32, %c0_i32_0 : i32, i32
  }
  func.func @transform_6(%arg0: i32) -> (i32, i32) {
    %c0_i32 = arith.constant 0 : i32
    %c0_i32_0 = arith.constant 0 : i32
    %c0_i32_1 = arith.constant 0 : i32
    return %c0_i32, %c0_i32_0 : i32, i32
  }
  func.func @transform_7(%arg0: i32) -> (i32, i32) {
    %c0_i32 = arith.constant 0 : i32
    %c0_i32_0 = arith.constant 0 : i32
    return %arg0, %c0_i32 : i32, i32
  }
}

</mosaic_0001>

<llo_original>
// kernel: mlp_block.1
$region0: #{mlp_block.1}
  #allocation0 [shape = 'u32[]', space=smem, size = 0x4, offset = 0x4, fixed_abs, tag = 'smem constant byte address 0x4 - core index']
  #allocation1 [shape = 'u32[144,128]{1,0:T(1,128)}', space=vmem, size = 0x12000, scoped, tag = 'internal scratch']
  %s0 = inlined_call_operand.vmem [shape: f32[16,32], index: 0, kind: input, shape index: {}]
  %s1 = inlined_call_operand.vmem [shape: f32[1,32], index: 1, kind: input, shape index: {}]
  %s2 = inlined_call_operand.vmem [shape: f32[1,32], index: 2, kind: input, shape index: {}]
  %s3 = inlined_call_operand.vmem [shape: bf16[32,128], index: 3, kind: input, shape index: {}]
  %s4 = inlined_call_operand.vmem [shape: bf16[1,128], index: 4, kind: input, shape index: {}]
  %s5 = inlined_call_operand.vmem [shape: bf16[128,32], index: 5, kind: input, shape index: {}]
  %s6 = inlined_call_operand.vmem [shape: f32[1,32], index: 6, kind: input, shape index: {}]
  %s7 = inlined_call_operand.hbm [shape: f32[16,32], index: 7, kind: output, shape index: {}]
  %s8 = sld [smem:[#allocation0]]
  $region38: #{mlp_block.1} parent=0
    _
  %s10 = ssub.s32 1, %s8
  %s11 = scalar_select 0, %s10, %s8
  $region1: #{mlp_block.1} parent=0
    #allocation2 [shape = 'u8[8192]{0}', space=vmem, size = 0x2000, scoped, tag = 'output window, operand 0, single buffered']
    #allocation3 [shape = 's32[1]{0}', space=sflag, size = 0x4, scoped, tag = 'scoped memory for mlp_block.1']
    %12 = vsyncpa [#allocation3], 0
    // Predicated region
    $region2: #{mlp_block.1} parent=1 // pred_check
      _
    $region3: #{mlp_block.1} parent=1 // pred_check_branch
      %14 = sbr.rel (0) target = $region5
    $region4: #{mlp_block.1} parent=1 // pred_region
      _
    $region5: #{mlp_block.1} parent=1 // pred_fallthru
      _
    // Predicated region
    $region6: #{mlp_block.1} parent=1 // pred_check
      _
    $region7: #{mlp_block.1} parent=1 // pred_check_branch
      %16 = sbr.rel (0) target = $region9
    $region8: #{mlp_block.1} parent=1 // pred_region
      _
    $region9: #{mlp_block.1} parent=1 // pred_fallthru
      _
    // Predicated region
    $region10: #{mlp_block.1} parent=1 // pred_check
      _
    $region11: #{mlp_block.1} parent=1 // pred_check_branch
      %18 = sbr.rel (0) target = $region13
    $region12: #{mlp_block.1} parent=1 // pred_region
      _
    $region13: #{mlp_block.1} parent=1 // pred_fallthru
      _
    // Predicated region
    $region14: #{mlp_block.1} parent=1 // pred_check
      _
    $region15: #{mlp_block.1} parent=1 // pred_check_branch
      %20 = sbr.rel (0) target = $region17
    $region16: #{mlp_block.1} parent=1 // pred_region
      _
    $region17: #{mlp_block.1} parent=1 // pred_fallthru
      _
    // Predicated region
    $region18: #{mlp_block.1} parent=1 // pred_check
      _
    $region19: #{mlp_block.1} parent=1 // pred_check_branch
      %22 = sbr.rel (0) target = $region21
    $region20: #{mlp_block.1} parent=1 // pred_region
      _
    $region21: #{mlp_block.1} parent=1 // pred_fallthru
      _
    // Predicated region
    $region22: #{mlp_block.1} parent=1 // pred_check
      _
    $region23: #{mlp_block.1} parent=1 // pred_check_branch
      %24 = sbr.rel (0) target = $region25
    $region24: #{mlp_block.1} parent=1 // pred_region
      _
    $region25: #{mlp_block.1} parent=1 // pred_fallthru
      _
    // Predicated region
    $region26: #{mlp_block.1} parent=1 // pred_check
      _
    $region27: #{mlp_block.1} parent=1 // pred_check_branch
      %26 = sbr.rel (0) target = $region29
    $region28: #{mlp_block.1} parent=1 // pred_region
      _
    $region29: #{mlp_block.1} parent=1 // pred_fallthru
      _
    %v32 = vld [vmem:[%s0] sm:$0xff]
    %v33 = vld [vmem:[%s0 + $0x8] sm:$0xff]
    %v34 = vld [vmem:[%s1] sm:$0x1]
    %v35 = vld [vmem:[%s2] sm:$0x1]
    %vm36 = vcmask 261120
    %v37 = vsel %vm36, %v32, 0.0
    %38 = vadd.xlane.f32.xlu0 %v37
    %v39 = vpop.xlane.xlu0 %38
    %v40 = vsel %vm36, %v33, 0.0
    %41 = vadd.xlane.f32.xlu0 %v40
    %v42 = vpop.xlane.xlu0 %41
    %v43 = vrcp.pop 32.0
    %v44 = vmul.f32 %v39, %v43
    %v45 = vmul.f32 %v42, %v43
    %v46 = vsub.f32 %v32, %v44
    %v47 = vsub.f32 %v33, %v45
    %v48 = vmul.f32 %v46, %v46
    %v49 = vmul.f32 %v47, %v47
    %v50 = vsel %vm36, %v48, 0.0
    %51 = vadd.xlane.f32.xlu0 %v50
    %v52 = vpop.xlane.xlu0 %51
    %v53 = vsel %vm36, %v49, 0.0
    %54 = vadd.xlane.f32.xlu0 %v53
    %v55 = vpop.xlane.xlu0 %54
    %v56 = vmul.f32 %v52, %v43
    %v57 = vmul.f32 %v55, %v43
    %v58 = vadd.f32 %v56, 1e-05
    %v59 = vadd.f32 %v57, 1e-05
    %v60 = vrsqrt.pop %v58
    %v61 = vrsqrt.pop %v59
    %v62 = vmul.f32 %v46, %v60
    %v63 = vmul.f32 %v47, %v61
    %v65 = vlaneseq
    %v66 = vshrl.u32 %v65, 7
    %v67 = vsub.s32 0, %v66
    %v68 = vrot.slane %v34, %v67
    %v70 = vmul.f32 %v62, %v68
    %v71 = vmul.f32 %v63, %v68
    %v73 = vlaneseq
    %v74 = vshrl.u32 %v73, 7
    %v75 = vsub.s32 0, %v74
    %v76 = vrot.slane %v35, %v75
    %v78 = vadd.f32 %v70, %v76
    %v79 = vadd.f32 %v71, %v76
    %v80 = vpack.c.bf16 %v79, %v78
    %v81 = vld [vmem:[%s3] sm:$0xf]
    %v82 = vld [vmem:[%s3 + $0x4] sm:$0xf]
    %v83 = vld [vmem:[%s3 + $0x8] sm:$0xf]
    %v84 = vld [vmem:[%s3 + $0xc] sm:$0xf]
    %v89 = vunpack.c.l.b16 %v81
    %v90 = vunpack.c.l.b16 %v82
    %v91 = vunpack.c.l.b16 %v83
    %v92 = vunpack.c.l.b16 %v84
    %v93 = vpack.c.b16 %v90, %v89
    %v94 = vpack.c.b16 %v92, %v91
    %v98 = vsel %vm36, %v80, 0
    %100 = vmatprep.subr.bf16.mxu0 0
    %101 = vmatpush1.bf16.msra.mxu0 0
    %102 = vmatprep.subr.bf16.mxu0 0
    %103 = vmatpush1.bf16.msra.mxu0 0
    %104 = vmatprep.subr.bf16.mxu0 0
    %105 = vmatpush1.bf16.msra.mxu0 0
    %106 = vmatprep.subr.bf16.mxu0 0
    %107 = vmatpush1.bf16.msra.mxu0 0
    %108 = vmatprep.subr.bf16.mxu0 0
    %109 = vmatpush1.bf16.msra.mxu0 0
    %110 = vmatprep.subr.bf16.mxu0 0
    %111 = vmatpush1.bf16.msra.mxu0 0
    %112 = vmatprep.subr.bf16.mxu0 0
    %113 = vmatpush1.bf16.msra.mxu0 %v94
    %114 = vmatprep.subr.bf16.mxu0 0
    %115 = vmatpush1.bf16.msra.mxu0 %v93
    %116 = vmatprep.subr.bf16.mxu0 0
    %117 = vmatpush2.bf16.msra.mxu0 0
    %118 = vmatprep.subr.bf16.mxu0 0
    %119 = vmatpush2.bf16.msra.mxu0 0
    %120 = vmatprep.subr.bf16.mxu0 0
    %121 = vmatpush2.bf16.msra.mxu0 0
    %122 = vmatprep.subr.bf16.mxu0 0
    %123 = vmatpush2.bf16.msra.mxu0 0
    %124 = vmatprep.subr.bf16.mxu0 0
    %125 = vmatpush2.bf16.msra.mxu0 0
    %126 = vmatprep.subr.bf16.mxu0 0
    %127 = vmatpush2.bf16.msra.mxu0 0
    %128 = vmatprep.subr.bf16.mxu0 0
    %129 = vmatpush2.bf16.msra.mxu0 0
    %130 = vmatprep.subr.bf16.mxu0 0
    %131 = vmatpush2.bf16.msra.mxu0 0
    %132 = vmatprep.mubr.bf16.mxu0 0
    %133 = vmatmul.mubr.bf16.gmra.mxu0 %v98
    %v134 = vpop.f32.mrf.mxu0
    %v135 = vadd.f32 0.0, %v134
    %v136 = vpop.f32.mrf.mxu0
    %v137 = vpop.f32.mrf.mxu0
    %v138 = vadd.f32 0.0, %v137
    %v139 = vpop.f32.mrf.mxu0
    %140 = vdwg.mxu0
    %v141 = vpack.c.bf16 %v138, %v135
    %v142 = vld [vmem:[%s4] sm:$0x1]
    %v144 = vpack.i.b16 %v142, %v142
    %v146 = vlaneseq
    %v147 = vshrl.u32 %v146, 7
    %v148 = vsub.s32 0, %v147
    %v149 = vrot.slane %v144, %v148
    %v150 = vadd.bf16 %v141, %v149
    %v151 = vmul.bf16 %v150, %v150
    %v152 = vmul.bf16 %v150, %v151
    %v153 = vmul.bf16 %v152, 1027030327
    %v154 = vadd.bf16 %v150, %v153
    %v155 = vmul.bf16 %v154, 1061961548
    %v156 = vtanh.bf16.pop %v155
    %v157 = vadd.bf16 %v156, 1065369472
    %v158 = vmul.bf16 %v157, 1056980736
    %v159 = vmul.bf16 %v150, %v158
    %v160 = vld [vmem:[%s5] sm:$0xf]
    %v161 = vld [vmem:[%s5 + $0x4] sm:$0xf]
    %v162 = vld [vmem:[%s5 + $0x8] sm:$0xf]
    %v163 = vld [vmem:[%s5 + $0xc] sm:$0xf]
    %v164 = vld [vmem:[%s5 + $0x10] sm:$0xf]
    %v165 = vld [vmem:[%s5 + $0x14] sm:$0xf]
    %v166 = vld [vmem:[%s5 + $0x18] sm:$0xf]
    %v167 = vld [vmem:[%s5 + $0x1c] sm:$0xf]
    %v168 = vld [vmem:[%s5 + $0x20] sm:$0xf]
    %v169 = vld [vmem:[%s5 + $0x24] sm:$0xf]
    %v170 = vld [vmem:[%s5 + $0x28] sm:$0xf]
    %v171 = vld [vmem:[%s5 + $0x2c] sm:$0xf]
    %v172 = vld [vmem:[%s5 + $0x30] sm:$0xf]
    %v173 = vld [vmem:[%s5 + $0x34] sm:$0xf]
    %v174 = vld [vmem:[%s5 + $0x38] sm:$0xf]
    %v175 = vld [vmem:[%s5 + $0x3c] sm:$0xf]
    %v176 = vld [vmem:[%s6] sm:$0x1]
    %v178 = vlaneseq
    %v179 = vshrl.u32 %v178, 7
    %v180 = vsub.s32 0, %v179
    %v181 = vrot.slane %v176, %v180
    %v199 = vunpack.c.l.b16 %v160
    %v200 = vunpack.c.l.b16 %v161
    %v201 = vunpack.c.l.b16 %v162
    %v202 = vunpack.c.l.b16 %v163
    %v203 = vunpack.c.l.b16 %v164
    %v204 = vunpack.c.l.b16 %v165
    %v205 = vunpack.c.l.b16 %v166
    %v206 = vunpack.c.l.b16 %v167
    %v207 = vunpack.c.l.b16 %v168
    %v208 = vunpack.c.l.b16 %v169
    %v209 = vunpack.c.l.b16 %v170
    %v210 = vunpack.c.l.b16 %v171
    %v211 = vunpack.c.l.b16 %v172
    %v212 = vunpack.c.l.b16 %v173
    %v213 = vunpack.c.l.b16 %v174
    %v214 = vunpack.c.l.b16 %v175
    %v215 = vpack.c.b16 %v200, %v199
    %v216 = vpack.c.b16 %v202, %v201
    %v217 = vpack.c.b16 %v204, %v203
    %v218 = vpack.c.b16 %v206, %v205
    %v219 = vpack.c.b16 %v208, %v207
    %v220 = vpack.c.b16 %v210, %v209
    %v221 = vpack.c.b16 %v212, %v211
    %v222 = vpack.c.b16 %v214, %v213
    %231 = vmatprep.subr.bf16.mxu0 0
    %232 = vmatpush1.bf16.msra.mxu0 %v222
    %233 = vmatprep.subr.bf16.mxu0 0
    %234 = vmatpush1.bf16.msra.mxu0 %v221
    %235 = vmatprep.subr.bf16.mxu0 0
    %236 = vmatpush1.bf16.msra.mxu0 %v220
    %237 = vmatprep.subr.bf16.mxu0 0
    %238 = vmatpush1.bf16.msra.mxu0 %v219
    %239 = vmatprep.subr.bf16.mxu0 0
    %240 = vmatpush1.bf16.msra.mxu0 %v218
    %241 = vmatprep.subr.bf16.mxu0 0
    %242 = vmatpush1.bf16.msra.mxu0 %v217
    %243 = vmatprep.subr.bf16.mxu0 0
    %244 = vmatpush1.bf16.msra.mxu0 %v216
    %245 = vmatprep.subr.bf16.mxu0 0
    %246 = vmatpush1.bf16.msra.mxu0 %v215
    %247 = vmatprep.subr.bf16.mxu0 0
    %248 = vmatpush2.bf16.msra.mxu0 0
    %249 = vmatprep.subr.bf16.mxu0 0
    %250 = vmatpush2.bf16.msra.mxu0 0
    %251 = vmatprep.subr.bf16.mxu0 0
    %252 = vmatpush2.bf16.msra.mxu0 0
    %253 = vmatprep.subr.bf16.mxu0 0
    %254 = vmatpush2.bf16.msra.mxu0 0
    %255 = vmatprep.subr.bf16.mxu0 0
    %256 = vmatpush2.bf16.msra.mxu0 0
    %257 = vmatprep.subr.bf16.mxu0 0
    %258 = vmatpush2.bf16.msra.mxu0 0
    %259 = vmatprep.subr.bf16.mxu0 0
    %260 = vmatpush2.bf16.msra.mxu0 0
    %261 = vmatprep.subr.bf16.mxu0 0
    %262 = vmatpush2.bf16.msra.mxu0 0
    %263 = vmatprep.mubr.bf16.mxu0 0
    %264 = vmatmul.mubr.bf16.gmra.mxu0 %v159
    %v265 = vpop.f32.mrf.mxu0
    %v266 = vadd.f32 %v181, %v265
    %v267 = vpop.f32.mrf.mxu0
    %v268 = vpop.f32.mrf.mxu0
    %v269 = vadd.f32 %v181, %v268
    %v270 = vpop.f32.mrf.mxu0
    %271 = vdwg.mxu0
    %272 = vst.msk [vmem:[#allocation2] sm:$0xff] %vm36, %v266
    %273 = vst.msk [vmem:[#allocation2 + $0x8] sm:$0xff] %vm36, %v269
    // Predicated region
    $region30: #{mlp_block.1} parent=1 // pred_check
      _
    $region31: #{mlp_block.1} parent=1 // pred_check_branch
      %275 = sbr.rel (0) target = $region33
    $region32: #{mlp_block.1} parent=1 // pred_region
      %s277 = ssub.s32 256, 256
      %278 = vsyncadd [#allocation3], %s277
      %s279 = sshll.u32 [#allocation2], 4
      %s280 = int_to_ptr.vmem [resolvable:$true] %s279
      %285 = dma.vmem_to_hbm [thread:$0]  %s280, 256, %s7, [#allocation3], 128, 128, 8
    $region33: #{mlp_block.1} parent=1 // pred_fallthru
      _
    // Predicated region
    $region34: #{mlp_block.1} parent=1 // pred_check
      _
    $region35: #{mlp_block.1} parent=1 // pred_check_branch
      %287 = sbr.rel (0) target = $region37
    $region36: #{mlp_block.1} parent=1 // pred_region
      %288 = dma.done [#allocation3], 256
    $region37: #{mlp_block.1} parent=1 // pred_fallthru
      _
    %289 = vsyncpa [#allocation3], 1

</llo_original>
